<compile_context>
chip_gen: v7x
topology: tpu7x:2x2x1
jax: 0.10.0
libtpu: 0.0.40
codegen_flags: <defaults>
</compile_context>

<pallas_src>
import math
import jax
import jax.numpy as jnp
from jax import lax
from jax.experimental import pallas as pl
from jax.experimental.pallas import tpu as pltpu

M = 4                      # angular margin order used by the module (default m=4)
_PI_TORCH = 3.14159265     # the constant the PyTorch code divides by

# thresholds such that floor(m * acos(c) / 3.14159265) >= j  <=>  c <= cos(j*3.14159265/m)
_K_THRESHOLDS = tuple(math.cos(j * _PI_TORCH / M) for j in range(1, M + 1))

TB_DEFAULT = 512           # batch tile: the primary lever on weight HBM traffic
TN_DEFAULT = 512           # class tile: multiple of 128 => lane-dense unmasked stores


def _round_up(a, m):
    return ((a + m - 1) // m) * m


def angle_linear_kernel(x_ref, w_ref, cos_out_ref, phi_out_ref, xlen_ref, inv_xlen_ref):
    # |x| bookkeeping is class-tile invariant: compute once per batch tile (j == 0)
    # into (tb, 1) f32 scratch instead of redoing the f32 upcast + lane reduction
    # + rsqrt for every class tile.
    @pl.when(pl.program_id(1) == 0)
    def _():
        xf = x_ref[...].astype(jnp.float32)
        sumsq = jnp.sum(xf * xf, axis=1, keepdims=True)        # (tb, 1)
        inv = lax.rsqrt(sumsq)                                  # 1 / |x|
        inv_xlen_ref[...] = inv
        xlen_ref[...] = sumsq * inv                             # |x|

    # MXU hot path: native-dtype inputs, f32 accumulation.
    dot = jnp.dot(x_ref[...], w_ref[...], preferred_element_type=jnp.float32)  # (tb, tn)
    c = jnp.clip(dot * inv_xlen_ref[...], -1.0, 1.0)            # cos_theta

    xlen = xlen_ref[...]
    # Write cos output early to shorten live ranges of the phi temporaries.
    cos_out_ref[...] = (c * xlen).astype(cos_out_ref.dtype)

    # mlambda[4](c) = 8 c^4 - 8 c^2 + 1  (Chebyshev T4)
    c2 = c * c
    cos_m_theta = 8.0 * c2 * c2 - 8.0 * c2 + 1.0

    # k = floor(m * acos(c) / 3.14159265) via monotone thresholds on c (no acos in-kernel).
    # Trimmed epilogue: int32 sum of the 4 compares (one int->f32 convert at the end);
    # (-1)^k from the xor-parity of the masks.
    b0 = c <= _K_THRESHOLDS[0]
    b1 = c <= _K_THRESHOLDS[1]
    b2 = c <= _K_THRESHOLDS[2]
    b3 = c <= _K_THRESHOLDS[3]
    ki = (b0.astype(jnp.int32) + b1.astype(jnp.int32)
          + b2.astype(jnp.int32) + b3.astype(jnp.int32))
    k = ki.astype(jnp.float32)
    sign = jnp.where(b0 ^ b1 ^ b2 ^ b3, -1.0, 1.0)              # (-1)^k

    phi_theta = sign * cos_m_theta - 2.0 * k
    phi_out_ref[...] = (phi_theta * xlen).astype(phi_out_ref.dtype)


def prepare_weight(weight, *, tn=TN_DEFAULT):
    """Column-normalize and lane-pad the weight (do once, cache across calls).

    ww = w.renorm(2,1,1e-5).mul(1e5) has (near-)unit-norm columns, and ww/||ww||_col
    == w/||w||_col in both renorm branches, so the kernel only needs the normalized
    column directions.  Re-doing this per step re-reads the whole D*C weight matrix.
    """
    D, C = weight.shape
    w32 = weight.astype(jnp.float32)
    col_norm = jnp.sqrt(jnp.sum(w32 * w32, axis=0, keepdims=True))
    w_hat = (w32 / col_norm).astype(weight.dtype)
    tn_eff = tn if C >= tn else _round_up(C, 128)
    C_pad = _round_up(C, tn_eff)
    if C_pad != C:
        w_hat = jnp.pad(w_hat, ((0, 0), (0, C_pad - C)))
    return w_hat, C, tn_eff


def _vmem_limit_bytes(tb, tn, D, x_itemsize, w_itemsize):
    # Double-buffered inputs + double-buffered f32 outputs + scratch, with headroom,
    # capped at 3/4 of physical VMEM (~48 MiB on v7x, ~96 MiB on v5e/v6e).
    working = (2 * (tb * D * x_itemsize + D * tn * w_itemsize)
               + 2 * 2 * tb * tn * 4
               + 2 * tb * 4)
    try:
        phys = pltpu.get_tpu_info().vmem_capacity_bytes
    except Exception:
        phys = 64 * 1024 * 1024
    cap = (phys * 3) // 4
    return int(min(cap, max(32 * 1024 * 1024, (working * 5) // 4)))


def angle_linear(x, weight=None, *, prepared=None, tb=TB_DEFAULT, tn=TN_DEFAULT):
    """Pallas forward of AngleLinear. Returns (cos_theta*|x|, phi_theta*|x|)."""
    if prepared is None:
        prepared = prepare_weight(weight, tn=tn)
    w_p, C, tn_eff = prepared
    B, D = x.shape
    assert w_p.shape[0] == D
    C_pad = w_p.shape[1]

    # Shrink the batch tile for small problems instead of padding B all the way up to tb.
    tb_eff = tb if B >= tb else _round_up(B, 8)
    B_pad = _round_up(B, tb_eff)
    x_p = jnp.pad(x, ((0, B_pad - B), (0, 0))) if B_pad != B else x

    x_itemsize = jnp.dtype(x_p.dtype).itemsize
    w_itemsize = jnp.dtype(w_p.dtype).itemsize
    cost = pl.CostEstimate(
        flops=2 * B_pad * D * C_pad,
        transcendentals=B_pad,                                     # one rsqrt per row
        bytes_accessed=(B_pad * D * x_itemsize
                        + (B_pad // tb_eff) * D * C_pad * w_itemsize  # weight re-streamed per batch tile
                        + 2 * B_pad * C_pad * 4),
    )

    out_shape = (
        jax.ShapeDtypeStruct((B_pad, C_pad), jnp.float32),
        jax.ShapeDtypeStruct((B_pad, C_pad), jnp.float32),
    )
    cos_p, phi_p = pl.pallas_call(
        angle_linear_kernel,
        out_shape=out_shape,
        grid_spec=pltpu.PrefetchScalarGridSpec(
            num_scalar_prefetch=0,
            # i (batch tiles) outer, j (class tiles) inner: x block index stays (i, 0),
            # so its DMA is elided across the inner class loop.
            grid=(B_pad // tb_eff, C_pad // tn_eff),
            in_specs=[
                pl.BlockSpec((tb_eff, D), lambda i, j: (i, 0)),    # batch tile of x
                pl.BlockSpec((D, tn_eff), lambda i, j: (0, j)),    # class tile of w_hat
            ],
            out_specs=[
                pl.BlockSpec((tb_eff, tn_eff), lambda i, j: (i, j)),
                pl.BlockSpec((tb_eff, tn_eff), lambda i, j: (i, j)),
            ],
            scratch_shapes=[
                pltpu.VMEM((tb_eff, 1), jnp.float32),   # |x|
                pltpu.VMEM((tb_eff, 1), jnp.float32),   # 1/|x|
            ],
        ),
        compiler_params=pltpu.CompilerParams(
            # j must be "arbitrary": the (tb,1) |x| scratch is filled at j == 0 and
            # reused across the remaining class tiles of the same batch tile.
            dimension_semantics=("parallel", "arbitrary"),
            vmem_limit_bytes=_vmem_limit_bytes(tb_eff, tn_eff, D, x_itemsize, w_itemsize),
        ),
        cost_estimate=cost,
    )(x_p, w_p)
    return cos_p[:B, :C], phi_p[:B, :C]


def angle_linear_ref(x, weight):
    """Pure-JAX reference mirroring the PyTorch forward (phiflag=True, m=4)."""
    x = x.astype(jnp.float32)
    w = weight.astype(jnp.float32)
    col_norm = jnp.sqrt(jnp.sum(w * w, axis=0, keepdims=True))
    ww = jnp.where(col_norm > 1e-5, w * (1e-5 / (col_norm + 1e-7)), w) * 1e5
    xlen = jnp.sqrt(jnp.sum(x * x, axis=1, keepdims=True))
    wlen = jnp.sqrt(jnp.sum(ww * ww, axis=0, keepdims=True))
    cos_theta = jnp.clip(x @ ww / xlen / wlen, -1.0, 1.0)
    cos_m_theta = 8 * cos_theta**4 - 8 * cos_theta**2 + 1
    theta = jnp.arccos(cos_theta)
    k = jnp.floor(M * theta / _PI_TORCH)
    phi_theta = (-1.0) ** k * cos_m_theta - 2.0 * k
    return cos_theta * xlen, phi_theta * xlen


if __name__ == "__main__":
    key = jax.random.PRNGKey(0)
    k_x, k_w = jax.random.split(key)

    B, IN_F, OUT_F = 16, 32, 16

    # Deterministic parameter init mirroring the module's __init__:
    # uniform(-1, 1) then renorm(2, 1, 1e-5).mul(1e5)  => unit-norm columns.
    w_raw = jax.random.uniform(k_w, (IN_F, OUT_F), jnp.float32, minval=-1.0, maxval=1.0)
    w_col_norm = jnp.sqrt(jnp.sum(w_raw * w_raw, axis=0, keepdims=True))
    weight = jnp.where(w_col_norm > 1e-5, w_raw * (1e-5 / (w_col_norm + 1e-7)), w_raw) * 1e5

    x = jax.random.normal(k_x, (B, IN_F), jnp.float32)

    # One-time (cacheable) weight preparation, then the kernel call.
    prepared = prepare_weight(weight)
    cos_out, phi_out = angle_linear(x, prepared=prepared)
    cos_out = jax.block_until_ready(cos_out)
    phi_out = jax.block_until_ready(phi_out)

    cos_ref, phi_ref = angle_linear_ref(x, weight)
    assert cos_out.shape == (B, OUT_F) and phi_out.shape == (B, OUT_F)
    assert jnp.allclose(cos_out, cos_ref, rtol=1e-4, atol=1e-4)
    assert jnp.allclose(phi_out, phi_ref, rtol=1e-4, atol=1e-4)

    print("KERNEL_OK")
</pallas_src>

<mosaic_0001>
module attributes {stable_mosaic.version = 11 : i64} {
  func.func @angle_linear_kernel(%arg0: i32, %arg1: i32, %arg2: memref<16x32xf32, #tpu.memory_space<vmem>>, %arg3: memref<32x128xf32, #tpu.memory_space<vmem>>, %arg4: memref<16x128xf32, #tpu.memory_space<vmem>>, %arg5: memref<16x128xf32, #tpu.memory_space<vmem>>, %arg6: memref<16x1xf32, #tpu.memory_space<vmem>>, %arg7: memref<16x1xf32, #tpu.memory_space<vmem>>) attributes {dimension_semantics = [#tpu.dimension_semantics<parallel>, #tpu.dimension_semantics<arbitrary>], iteration_bounds = array<i64: 1, 1>, scalar_prefetch = 0 : i64, scratch_operands = 2 : i64, tpu.core_type = #tpu.core_type<tc>, window_params = [{transform_indices = @transform_0, window_bounds = array<i64: 16, 32>}, {transform_indices = @transform_1, window_bounds = array<i64: 32, 128>}, {transform_indices = @transform_2, window_bounds = array<i64: 16, 128>}, {transform_indices = @transform_3, window_bounds = array<i64: 16, 128>}]} {
    %c0_i32 = arith.constant 0 : i32
    %0 = arith.cmpi eq, %arg1, %c0_i32 : i32
    %1 = arith.extui %0 : i1 to i32
    %c0_i32_0 = arith.constant 0 : i32
    %2 = arith.cmpi ne, %1, %c0_i32_0 : i32
    scf.if %2 {
      %c0_24 = arith.constant 0 : index
      %c0_25 = arith.constant 0 : index
      %55 = vector.load %arg2[%c0_24, %c0_25] : memref<16x32xf32, #tpu.memory_space<vmem>>, vector<16x32xf32>
      %56 = arith.mulf %55, %55 : vector<16x32xf32>
      %cst_26 = arith.constant dense<0.000000e+00> : vector<16xf32>
      %57 = vector.multi_reduction <add>, %56, %cst_26 [1] : vector<16x32xf32> to vector<16xf32>
      %58 = vector.shape_cast %57 : vector<16xf32> to vector<16x1xf32>
      %59 = math.rsqrt %58 : vector<16x1xf32>
      %c0_27 = arith.constant 0 : index
      %c0_28 = arith.constant 0 : index
      %60 = vector.load %arg7[%c0_27, %c0_28] : memref<16x1xf32, #tpu.memory_space<vmem>>, vector<16x1xf32>
      tpu.vector_store %arg7[%c0_27, %c0_28], %59 {strides = array<i32>} : memref<16x1xf32, #tpu.memory_space<vmem>>, vector<16x1xf32>,
      %61 = arith.mulf %58, %59 : vector<16x1xf32>
      %c0_29 = arith.constant 0 : index
      %c0_30 = arith.constant 0 : index
      %62 = vector.load %arg6[%c0_29, %c0_30] : memref<16x1xf32, #tpu.memory_space<vmem>>, vector<16x1xf32>
      tpu.vector_store %arg6[%c0_29, %c0_30], %61 {strides = array<i32>} : memref<16x1xf32, #tpu.memory_space<vmem>>, vector<16x1xf32>,
    } else {
    }
    %c0 = arith.constant 0 : index
    %c0_1 = arith.constant 0 : index
    %3 = vector.load %arg2[%c0, %c0_1] : memref<16x32xf32, #tpu.memory_space<vmem>>, vector<16x32xf32>
    %c0_2 = arith.constant 0 : index
    %c0_3 = arith.constant 0 : index
    %4 = vector.load %arg3[%c0_2, %c0_3] : memref<32x128xf32, #tpu.memory_space<vmem>>, vector<32x128xf32>
    %cst = arith.constant dense<0.000000e+00> : vector<16x128xf32>
    %5 = tpu.matmul %3, %4, %cst {dimension_numbers = #tpu.dot_dimension_numbers<[1], [0], [0], [1], [0, 0, 1, 1], [], []>} : vector<16x32xf32>, vector<32x128xf32>, vector<16x128xf32> -> vector<16x128xf32>
    %c0_4 = arith.constant 0 : index
    %c0_5 = arith.constant 0 : index
    %6 = vector.load %arg7[%c0_4, %c0_5] : memref<16x1xf32, #tpu.memory_space<vmem>>, vector<16x1xf32>
    %7 = vector.broadcast %6 : vector<16x1xf32> to vector<16x128xf32>
    %8 = arith.mulf %5, %7 : vector<16x128xf32>
    %cst_6 = arith.constant -1.000000e+00 : f32
    %cst_7 = arith.constant 1.000000e+00 : f32
    %9 = vector.broadcast %cst_6 : f32 to vector<16x128xf32>
    %10 = arith.maximumf %9, %8 : vector<16x128xf32>
    %11 = vector.broadcast %cst_7 : f32 to vector<16x128xf32>
    %12 = arith.minimumf %11, %10 : vector<16x128xf32>
    %c0_8 = arith.constant 0 : index
    %c0_9 = arith.constant 0 : index
    %13 = vector.load %arg6[%c0_8, %c0_9] : memref<16x1xf32, #tpu.memory_space<vmem>>, vector<16x1xf32>
    %14 = vector.broadcast %13 : vector<16x1xf32> to vector<16x128xf32>
    %15 = arith.mulf %12, %14 : vector<16x128xf32>
    %c0_10 = arith.constant 0 : index
    %c0_11 = arith.constant 0 : index
    %16 = vector.load %arg4[%c0_10, %c0_11] : memref<16x128xf32, #tpu.memory_space<vmem>>, vector<16x128xf32>
    tpu.vector_store %arg4[%c0_10, %c0_11], %15 {strides = array<i32>} : memref<16x128xf32, #tpu.memory_space<vmem>>, vector<16x128xf32>,
    %17 = arith.mulf %12, %12 : vector<16x128xf32>
    %cst_12 = arith.constant 8.000000e+00 : f32
    %18 = vector.broadcast %cst_12 : f32 to vector<16x128xf32>
    %19 = arith.mulf %18, %17 : vector<16x128xf32>
    %20 = arith.mulf %19, %17 : vector<16x128xf32>
    %cst_13 = arith.constant 8.000000e+00 : f32
    %21 = vector.broadcast %cst_13 : f32 to vector<16x128xf32>
    %22 = arith.mulf %21, %17 : vector<16x128xf32>
    %23 = arith.subf %20, %22 : vector<16x128xf32>
    %cst_14 = arith.constant 1.000000e+00 : f32
    %24 = vector.broadcast %cst_14 : f32 to vector<16x128xf32>
    %25 = arith.addf %23, %24 : vector<16x128xf32>
    %cst_15 = arith.constant 0.707106769 : f32
    %26 = vector.broadcast %cst_15 : f32 to vector<16x128xf32>
    %27 = arith.cmpf ole, %12, %26 : vector<16x128xf32>
    %cst_16 = arith.constant 1.79489656E-9 : f32
    %28 = vector.broadcast %cst_16 : f32 to vector<16x128xf32>
    %29 = arith.cmpf ole, %12, %28 : vector<16x128xf32>
    %cst_17 = arith.constant -0.707106769 : f32
    %30 = vector.broadcast %cst_17 : f32 to vector<16x128xf32>
    %31 = arith.cmpf ole, %12, %30 : vector<16x128xf32>
    %cst_18 = arith.constant -1.000000e+00 : f32
    %32 = vector.broadcast %cst_18 : f32 to vector<16x128xf32>
    %33 = arith.cmpf ole, %12, %32 : vector<16x128xf32>
    %34 = arith.extui %27 : vector<16x128xi1> to vector<16x128xi32>
    %35 = arith.extui %29 : vector<16x128xi1> to vector<16x128xi32>
    %36 = arith.addi %34, %35 : vector<16x128xi32>
    %37 = arith.extui %31 : vector<16x128xi1> to vector<16x128xi32>
    %38 = arith.addi %36, %37 : vector<16x128xi32>
    %39 = arith.extui %33 : vector<16x128xi1> to vector<16x128xi32>
    %40 = arith.addi %38, %39 : vector<16x128xi32>
    %41 = arith.sitofp %40 : vector<16x128xi32> to vector<16x128xf32>
    %42 = arith.xori %27, %29 : vector<16x128xi1>
    %43 = arith.xori %42, %31 : vector<16x128xi1>
    %44 = arith.xori %43, %33 : vector<16x128xi1>
    %cst_19 = arith.constant -1.000000e+00 : f32
    %cst_20 = arith.constant 1.000000e+00 : f32
    %45 = vector.broadcast %cst_19 : f32 to vector<16x128xf32>
    %46 = vector.broadcast %cst_20 : f32 to vector<16x128xf32>
    %47 = arith.select %44, %45, %46 : vector<16x128xi1>, vector<16x128xf32>
    %48 = arith.mulf %47, %25 : vector<16x128xf32>
    %cst_21 = arith.constant 2.000000e+00 : f32
    %49 = vector.broadcast %cst_21 : f32 to vector<16x128xf32>
    %50 = arith.mulf %49, %41 : vector<16x128xf32>
    %51 = arith.subf %48, %50 : vector<16x128xf32>
    %52 = vector.broadcast %13 : vector<16x1xf32> to vector<16x128xf32>
    %53 = arith.mulf %51, %52 : vector<16x128xf32>
    %c0_22 = arith.constant 0 : index
    %c0_23 = arith.constant 0 : index
    %54 = vector.load %arg5[%c0_22, %c0_23] : memref<16x128xf32, #tpu.memory_space<vmem>>, vector<16x128xf32>
    tpu.vector_store %arg5[%c0_22, %c0_23], %53 {strides = array<i32>} : memref<16x128xf32, #tpu.memory_space<vmem>>, vector<16x128xf32>,
    return
  }
  func.func @transform_0(%arg0: i32, %arg1: i32) -> (i32, i32) {
    %c0_i32 = arith.constant 0 : i32
    %c0_i32_0 = arith.constant 0 : i32
    return %arg0, %c0_i32 : i32, i32
  }
  func.func @transform_1(%arg0: i32, %arg1: i32) -> (i32, i32) {
    %c0_i32 = arith.constant 0 : i32
    %c0_i32_0 = arith.constant 0 : i32
    return %c0_i32, %arg1 : i32, i32
  }
  func.func @transform_2(%arg0: i32, %arg1: i32) -> (i32, i32) {
    %c0_i32 = arith.constant 0 : i32
    return %arg0, %arg1 : i32, i32
  }
  func.func @transform_3(%arg0: i32, %arg1: i32) -> (i32, i32) {
    %c0_i32 = arith.constant 0 : i32
    return %arg0, %arg1 : i32, i32
  }
}

</mosaic_0001>

<llo_original>
// kernel: tpu_custom_call.1
$region0: #{tpu_custom_call.1}
  #allocation0 [shape = 'u32[]', space=smem, size = 0x4, offset = 0x4, fixed_abs, tag = 'smem constant byte address 0x4 - core index']
  #allocation1 [shape = 'u32[144,128]{1,0:T(1,128)}', space=vmem, size = 0x12000, scoped, tag = 'internal scratch']
  #allocation2 [shape = 'f32[16,1]{1,0:T(8,128)}', space=vmem, size = 0x2000, scoped, tag = 'scratch operand']
  #allocation3 [shape = 'f32[16,1]{1,0:T(8,128)}', space=vmem, size = 0x2000, scoped, tag = 'scratch operand']
  %s0 = inlined_call_operand.hbm [shape: f32[16,32], index: 0, kind: input, shape index: {}]
  %s1 = inlined_call_operand.hbm [shape: f32[32,128], index: 1, kind: input, shape index: {}]
  %s2 = inlined_call_operand.hbm [shape: f32[16,128], index: 2, kind: output, shape index: {0}]
  %s3 = inlined_call_operand.hbm [shape: f32[16,128], index: 3, kind: output, shape index: {1}]
  %4 = xla_tuple %s2, %s3
  %s5 = sld [smem:[#allocation0]]
  $region38: #{tpu_custom_call.1} parent=0
    _
  %s7 = ssub.s32 1, %s5
  %s8 = scalar_select 0, %s7, %s5
  $region1: #{tpu_custom_call.1} parent=0
    #allocation4 [shape = 'u8[8192]{0}', space=vmem, size = 0x2000, scoped, tag = 'input window, operand 0, single buffered']
    #allocation5 [shape = 's32[1]{0}', space=sflag, size = 0x4, scoped, tag = 'scoped memory for tpu_custom_call.1']
    #allocation6 [shape = 's32[1]{0}', space=sflag, size = 0x4, scoped, tag = 'scoped memory for tpu_custom_call.1']
    #allocation7 [shape = 'u8[16384]{0}', space=vmem, size = 0x4000, scoped, tag = 'input window, operand 1, single buffered']
    #allocation8 [shape = 's32[1]{0}', space=sflag, size = 0x4, scoped, tag = 'scoped memory for tpu_custom_call.1']
    #allocation9 [shape = 'u8[8192]{0}', space=vmem, size = 0x2000, scoped, tag = 'output window, operand 0, single buffered']
    #allocation10 [shape = 'u8[8192]{0}', space=vmem, size = 0x2000, scoped, tag = 'output window, operand 1, single buffered']
    #allocation11 [shape = 's32[1]{0}', space=sflag, size = 0x4, scoped, tag = 'scoped memory for tpu_custom_call.1']
    %9 = vsyncpa [#allocation5], 0
    %10 = vsyncpa [#allocation8], 0
    %11 = vsyncpa [#allocation6], 0
    %12 = vsyncpa [#allocation11], 0
    // Predicated region
    $region2: #{tpu_custom_call.1} parent=1 // pred_check
      _
    $region3: #{tpu_custom_call.1} parent=1 // pred_check_branch
      %14 = sbr.rel (0) target = $region5
    $region4: #{tpu_custom_call.1} parent=1 // pred_region
      %s16 = ssub.s32 256, 256
      %17 = vsyncadd [#allocation5], %s16
      %s18 = sshll.u32 [#allocation4], 4
      %s19 = int_to_ptr.vmem [resolvable:$true] %s18
      %24 = dma.hbm_to_vmem [thread:$0]  %s0, 256, %s19, [#allocation5], 128, 128, 8
    $region5: #{tpu_custom_call.1} parent=1 // pred_fallthru
      _
    // Predicated region
    $region6: #{tpu_custom_call.1} parent=1 // pred_check
      _
    $region7: #{tpu_custom_call.1} parent=1 // pred_check_branch
      %26 = sbr.rel (0) target = $region9
    $region8: #{tpu_custom_call.1} parent=1 // pred_region
      %s28 = ssub.s32 512, 512
      %29 = vsyncadd [#allocation8], %s28
      %s30 = sshll.u32 [#allocation7], 4
      %s31 = int_to_ptr.vmem [resolvable:$true] %s30
      %36 = dma.hbm_to_vmem [thread:$0]  %s1, 512, %s31, [#allocation8], 128, 128, 8
    $region9: #{tpu_custom_call.1} parent=1 // pred_fallthru
      _
    // Predicated region
    $region10: #{tpu_custom_call.1} parent=1 // pred_check
      _
    $region11: #{tpu_custom_call.1} parent=1 // pred_check_branch
      %38 = sbr.rel (0) target = $region13
    $region12: #{tpu_custom_call.1} parent=1 // pred_region
      %39 = dma.done [#allocation5], 256
    $region13: #{tpu_custom_call.1} parent=1 // pred_fallthru
      _
    // Predicated region
    $region14: #{tpu_custom_call.1} parent=1 // pred_check
      _
    $region15: #{tpu_custom_call.1} parent=1 // pred_check_branch
      %41 = sbr.rel (0) target = $region17
    $region16: #{tpu_custom_call.1} parent=1 // pred_region
      %42 = dma.done [#allocation8], 512
    $region17: #{tpu_custom_call.1} parent=1 // pred_fallthru
      _
    %p43 = scmp.eq.s32.totalorder 0, 0
    // Predicated region
    $region18: #{tpu_custom_call.1} parent=1 // pred_check
      %p44 = pneg %p43
    $region19: #{tpu_custom_call.1} parent=1 // pred_check_branch
      %46 = sbr.rel (%p44) target = $region21
    $region20: #{tpu_custom_call.1} parent=1 // pred_region
      %v47 = vld [vmem:[#allocation4] sm:$0xff]
      %v48 = vld [vmem:[#allocation4 + $0x8] sm:$0xff]
      %v49 = vmul.f32 %v47, %v47
      %v50 = vmul.f32 %v48, %v48
      %vm51 = vcmask 261120
      %v52 = vsel %vm51, %v49, 0.0
      %53 = vadd.xlane.f32.xlu0 %v52
      %v54 = vpop.xlane.xlu0 %53
      %v55 = vsel %vm51, %v50, 0.0
      %56 = vadd.xlane.f32.xlu0 %v55
      %v57 = vpop.xlane.xlu0 %56
      %v58 = vrsqrt.pop %v54
      %v59 = vrsqrt.pop %v57
      %vm60 = vcmask 7168
      %61 = vst.msk [vmem:[#allocation3] sm:$0xff] %vm60, %v58
      %62 = vst.msk [vmem:[#allocation3 + $0x8] sm:$0xff] %vm60, %v59
      %v63 = vmul.f32 %v54, %v58
      %v64 = vmul.f32 %v57, %v59
      %65 = vst.msk [vmem:[#allocation2] sm:$0xff] %vm60, %v63
      %66 = vst.msk [vmem:[#allocation2 + $0x8] sm:$0xff] %vm60, %v64
    $region21: #{tpu_custom_call.1} parent=1 // pred_fallthru
      _
    %v67 = vld [vmem:[#allocation4] sm:$0xff]
    %v68 = vld [vmem:[#allocation4 + $0x8] sm:$0xff]
    %v69 = vld [vmem:[#allocation7] sm:$0xff]
    %v70 = vld [vmem:[#allocation7 + $0x8] sm:$0xff]
    %v71 = vld [vmem:[#allocation7 + $0x10] sm:$0xff]
    %v72 = vld [vmem:[#allocation7 + $0x18] sm:$0xff]
    %vm73 = vcmask 261120
    %v75 = vsel %vm73, %v67, 0
    %v78 = vsel %vm73, %v68, 0
    %80 = vmatprep.subr.mxu0 0.0
    %81 = vmatpush1.msra.mxu0 %v69
    %82 = vmatprep.subr.mxu0 0.0
    %83 = vmatpush1.msra.mxu0 %v70
    %84 = vmatprep.subr.mxu0 0.0
    %85 = vmatpush1.msra.mxu0 %v71
    %86 = vmatprep.subr.mxu0 0.0
    %87 = vmatpush1.msra.mxu0 %v72
    %88 = vmatprep.subr.mxu0 0.0
    %89 = vmatpush1.msra.mxu0 0.0
    %90 = vmatprep.subr.mxu0 0.0
    %91 = vmatpush1.msra.mxu0 0.0
    %92 = vmatprep.subr.mxu0 0.0
    %93 = vmatpush1.msra.mxu0 0.0
    %94 = vmatprep.subr.mxu0 0.0
    %95 = vmatpush1.msra.mxu0 0.0
    %96 = vmatprep.subr.mxu0 0.0
    %97 = vmatpush1.msra.mxu0 0.0
    %98 = vmatprep.subr.mxu0 0.0
    %99 = vmatpush1.msra.mxu0 0.0
    %100 = vmatprep.subr.mxu0 0.0
    %101 = vmatpush1.msra.mxu0 0.0
    %102 = vmatprep.subr.mxu0 0.0
    %103 = vmatpush1.msra.mxu0 0.0
    %104 = vmatprep.subr.mxu0 0.0
    %105 = vmatpush1.msra.mxu0 0.0
    %106 = vmatprep.subr.mxu0 0.0
    %107 = vmatpush1.msra.mxu0 0.0
    %108 = vmatprep.subr.mxu0 0.0
    %109 = vmatpush1.msra.mxu0 0.0
    %110 = vmatprep.subr.mxu0 0.0
    %111 = vmatpush1.msra.mxu0 0.0
    %112 = vmatprep.subr.mxu0 0.0
    %113 = vmatpush1.msra.mxu0 0.0
    %114 = vmatprep.subr.mxu0 0.0
    %115 = vmatpush1.msra.mxu0 0.0
    %116 = vmatprep.subr.mxu0 0.0
    %117 = vmatpush1.msra.mxu0 0.0
    %118 = vmatprep.subr.mxu0 0.0
    %119 = vmatpush1.msra.mxu0 0.0
    %120 = vmatprep.subr.mxu0 0.0
    %121 = vmatpush1.msra.mxu0 0.0
    %122 = vmatprep.subr.mxu0 0.0
    %123 = vmatpush1.msra.mxu0 0.0
    %124 = vmatprep.subr.mxu0 0.0
    %125 = vmatpush1.msra.mxu0 0.0
    %126 = vmatprep.subr.mxu0 0.0
    %127 = vmatpush1.msra.mxu0 0.0
    %128 = vmatprep.subr.mxu0 0.0
    %129 = vmatpush1.msra.mxu0 0.0
    %130 = vmatprep.subr.mxu0 0.0
    %131 = vmatpush1.msra.mxu0 0.0
    %132 = vmatprep.subr.mxu0 0.0
    %133 = vmatpush1.msra.mxu0 0.0
    %134 = vmatprep.subr.mxu0 0.0
    %135 = vmatpush1.msra.mxu0 0.0
    %136 = vmatprep.subr.mxu0 0.0
    %137 = vmatpush1.msra.mxu0 0.0
    %138 = vmatprep.subr.mxu0 0.0
    %139 = vmatpush1.msra.mxu0 0.0
    %140 = vmatprep.subr.mxu0 0.0
    %141 = vmatpush1.msra.mxu0 0.0
    %142 = vmatprep.subr.mxu0 0.0
    %143 = vmatpush1.msra.mxu0 0.0
    %144 = vmatprep.mubr.f32.mxu0 0.0
    %145 = vmatmul.mubr.f32.gmra.mrb[0].mxu0 %v75
    %v146 = vpop.f32.mrb[0].mxu0
    %v147 = vadd.f32 0.0, %v146
    %v148 = vpop.f32.mrb[0].mxu0
    %149 = vmatprep.mubr.f32.mxu0 0.0
    %150 = vmatmul.mubr.f32.gmra.mrb[0].mxu0 %v78
    %v151 = vpop.f32.mrb[0].mxu0
    %v152 = vadd.f32 0.0, %v151
    %v153 = vpop.f32.mrb[0].mxu0
    %154 = vdwg.mxu0
    %v155 = vld [vmem:[#allocation3] sm:$0xff]
    %v156 = vld [vmem:[#allocation3 + $0x8] sm:$0xff]
    %158 = vset.pattern.permute.xlu0 0
    %159 = vperm.xlu0 %158, %v155
    %v160 = vpop.permute.xlu0 %159
    %163 = vset.pattern.permute.xlu0 0
    %164 = vperm.xlu0 %163, %v156
    %v165 = vpop.permute.xlu0 %164
    %v167 = vmul.f32 %v147, %v160
    %v168 = vmul.f32 %v152, %v165
    %v169 = vmax.f32 %v167, -1.0
    %v170 = vmax.f32 %v168, -1.0
    %v171 = vmin.f32 %v169, 1.0
    %v172 = vmin.f32 %v170, 1.0
    %v173 = vld [vmem:[#allocation2] sm:$0xff]
    %v174 = vld [vmem:[#allocation2 + $0x8] sm:$0xff]
    %176 = vset.pattern.permute.xlu0 0
    %177 = vperm.xlu0 %176, %v173
    %v178 = vpop.permute.xlu0 %177
    %181 = vset.pattern.permute.xlu0 0
    %182 = vperm.xlu0 %181, %v174
    %v183 = vpop.permute.xlu0 %182
    %v185 = vmul.f32 %v171, %v178
    %v186 = vmul.f32 %v172, %v183
    %187 = vst [vmem:[#allocation9] sm:$0xff] %v185
    %188 = vst [vmem:[#allocation9 + $0x8] sm:$0xff] %v186
    %v189 = vmul.f32 %v171, %v171
    %v190 = vmul.f32 %v172, %v172
    %v191 = vmul.f32 %v189, 8.0
    %v192 = vmul.f32 %v190, 8.0
    %v193 = vmul.f32 %v191, %v189
    %v194 = vmul.f32 %v192, %v190
    %v195 = vsub.f32 %v193, %v191
    %v196 = vsub.f32 %v194, %v192
    %v197 = vadd.f32 %v195, 1.0
    %v198 = vadd.f32 %v196, 1.0
    %vm199 = vcmp.le.f32.partialorder %v171, 0.70710677
    %vm200 = vcmp.le.f32.partialorder %v172, 0.70710677
    %vm201 = vcmp.le.f32.partialorder %v171, 1.7948966e-09
    %vm202 = vcmp.le.f32.partialorder %v172, 1.7948966e-09
    %vm203 = vcmp.le.f32.partialorder %v171, -0.70710677
    %vm204 = vcmp.le.f32.partialorder %v172, -0.70710677
    %vm205 = vcmp.le.f32.partialorder %v171, -1.0
    %vm206 = vcmp.le.f32.partialorder %v172, -1.0
    %v207 = vsel %vm199, 1, 0
    %v208 = vsel %vm200, 1, 0
    %v209 = vsel %vm201, 1, 0
    %v210 = vsel %vm202, 1, 0
    %v211 = vadd.s32 %v207, %v209
    %v212 = vadd.s32 %v208, %v210
    %v213 = vsel %vm203, 1, 0
    %v214 = vsel %vm204, 1, 0
    %v215 = vadd.s32 %v211, %v213
    %v216 = vadd.s32 %v212, %v214
    %v217 = vsel %vm205, 1, 0
    %v218 = vsel %vm206, 1, 0
    %v219 = vadd.s32 %v215, %v217
    %v220 = vadd.s32 %v216, %v218
    %v221 = vcvt.s32.f32 %v219
    %v222 = vcvt.s32.f32 %v220
    %vm223 = vmxor %vm199, %vm201
    %vm224 = vmxor %vm200, %vm202
    %vm225 = vmxor %vm223, %vm203
    %vm226 = vmxor %vm224, %vm204
    %vm227 = vmxor %vm225, %vm205
    %vm228 = vmxor %vm226, %vm206
    %v229 = vsel %vm227, -1.0, 1.0
    %v230 = vsel %vm228, -1.0, 1.0
    %v231 = vmul.f32 %v229, %v197
    %v232 = vmul.f32 %v230, %v198
    %v233 = vmul.f32 %v221, 2.0
    %v234 = vmul.f32 %v222, 2.0
    %v235 = vsub.f32 %v231, %v233
    %v236 = vsub.f32 %v232, %v234
    %v237 = vmul.f32 %v235, %v178
    %v238 = vmul.f32 %v236, %v183
    %239 = vst [vmem:[#allocation10] sm:$0xff] %v237
    %240 = vst [vmem:[#allocation10 + $0x8] sm:$0xff] %v238
    // Predicated region
    $region22: #{tpu_custom_call.1} parent=1 // pred_check
      _
    $region23: #{tpu_custom_call.1} parent=1 // pred_check_branch
      %242 = sbr.rel (0) target = $region25
    $region24: #{tpu_custom_call.1} parent=1 // pred_region
      %s244 = ssub.s32 256, 256
      %245 = vsyncadd [#allocation6], %s244
      %s246 = sshll.u32 [#allocation9], 4
      %s247 = int_to_ptr.vmem [resolvable:$true] %s246
      %252 = dma.vmem_to_hbm [thread:$0]  %s247, 256, %s2, [#allocation6], 128, 128, 8
    $region25: #{tpu_custom_call.1} parent=1 // pred_fallthru
      _
    // Predicated region
    $region26: #{tpu_custom_call.1} parent=1 // pred_check
      _
    $region27: #{tpu_custom_call.1} parent=1 // pred_check_branch
      %254 = sbr.rel (0) target = $region29
    $region28: #{tpu_custom_call.1} parent=1 // pred_region
      %s256 = ssub.s32 256, 256
      %257 = vsyncadd [#allocation11], %s256
      %s258 = sshll.u32 [#allocation10], 4
      %s259 = int_to_ptr.vmem [resolvable:$true] %s258
      %264 = dma.vmem_to_hbm [thread:$0]  %s259, 256, %s3, [#allocation11], 128, 128, 8
    $region29: #{tpu_custom_call.1} parent=1 // pred_fallthru
      _
    // Predicated region
    $region30: #{tpu_custom_call.1} parent=1 // pred_check
      _
    $region31: #{tpu_custom_call.1} parent=1 // pred_check_branch
      %266 = sbr.rel (0) target = $region33
    $region32: #{tpu_custom_call.1} parent=1 // pred_region
      %267 = dma.done [#allocation6], 256
    $region33: #{tpu_custom_call.1} parent=1 // pred_fallthru
      _
    // Predicated region
    $region34: #{tpu_custom_call.1} parent=1 // pred_check
      _
    $region35: #{tpu_custom_call.1} parent=1 // pred_check_branch
      %269 = sbr.rel (0) target = $region37
    $region36: #{tpu_custom_call.1} parent=1 // pred_region
      %270 = dma.done [#allocation11], 256
    $region37: #{tpu_custom_call.1} parent=1 // pred_fallthru
      _
    %271 = vsyncpa [#allocation5], 1
    %272 = vsyncpa [#allocation8], 1
    %273 = vsyncpa [#allocation6], 1
    %274 = vsyncpa [#allocation11], 1

</llo_original>
